<compile_context>
chip_gen: v5e
topology: v5e:2x2
jax: 0.10.0
libtpu: 0.0.40
codegen_flags: <defaults>
</compile_context>

<pallas_src>
import math

import jax
import jax.numpy as jnp
from jax.experimental import pallas as pl
from jax.experimental.pallas import tpu as pltpu

_LANE = 128  # lane width (fast axis)


def _round_up(x: int, m: int) -> int:
    return (x + m - 1) // m * m


def _round_down(x: int, m: int) -> int:
    return max(m, (x // m) * m)


def _broadcast_row_kernel(emb_ref, out_ref):
    # emb_ref : (1, tile_d)      VMEM tile of the parameter (constant block)
    # out_ref : (tile_n, tile_d) VMEM tile of the output
    # Single sublane broadcast per block; Mosaic hoists this so the steady
    # state is store-only (hygiene note from the perf review).
    out_ref[...] = jnp.broadcast_to(emb_ref[...], out_ref.shape)


def _tpu_budgets() -> tuple[int, int]:
    """Generation-aware (target_block_bytes, vmem_limit_cap)."""
    try:
        vmem_cap = int(pltpu.get_tpu_info().vmem_capacity_bytes)
    except Exception:  # no TPU info available at trace time -> conservative
        vmem_cap = 64 << 20
    if vmem_cap <= (64 << 20):
        # v7x: 64 MiB VMEM, ~3.2 TB/s HBM. 16 MiB blocks keep per-step overhead
        # <10%; 2x16 MiB double-buffered output stays well under 40 MiB.
        return 16 << 20, 40 << 20
    # v5e / v6e: 128 MiB VMEM -> plenty of headroom for 16 MiB blocks.
    return 16 << 20, 64 << 20


def _broadcast_rows(emb_row: jax.Array, n: int, d: int) -> jax.Array:
    """Return (n, d) with emb_row (1, d) repeated n times, via Pallas."""
    dtype = emb_row.dtype
    itemsize = jnp.dtype(dtype).itemsize
    target_block_bytes, vmem_cap_limit = _tpu_budgets()

    # Sublane packing: f32 -> 8, bf16 -> 16, int8/fp8 -> 32 rows per vreg tile.
    packing = max(1, 4 // itemsize)
    sub_mult = 8 * packing
    row_bytes = d * itemsize

    if sub_mult * row_bytes <= target_block_bytes:
        # --- main path: full-row blocks, 1-D grid ---------------------------
        tile_d = d
        rows_budget = _round_down(target_block_bytes // row_bytes, sub_mult)
        tile_n = min(_round_up(n, sub_mult), rows_budget)
        grid = (pl.cdiv(n, tile_n),)
        # Constant block index -> embedding DMA'd exactly once.
        in_specs = [pl.BlockSpec((1, tile_d), lambda i: (0, 0))]
        out_specs = pl.BlockSpec((tile_n, tile_d), lambda i: (i, 0))
        dim_sem = ("parallel",)
    else:
        # --- fallback: even sub_mult full rows exceed the budget ------------
        tile_n = sub_mult
        if d % _LANE == 0:
            tile_d = min(_round_down(target_block_bytes // (tile_n * itemsize),
                                     _LANE), d)
        else:
            tile_d = d  # full-extent lane block (cannot split raggedly)
        grid = (pl.cdiv(n, tile_n), pl.cdiv(d, tile_d))
        in_specs = [pl.BlockSpec((1, tile_d), lambda i, j: (0, j))]
        out_specs = pl.BlockSpec((tile_n, tile_d), lambda i, j: (i, j))
        dim_sem = ("parallel", "parallel")

    # Double-buffered output block + (tiny) parameter block + slack.
    vmem_needed = 2 * (tile_n * tile_d + tile_d) * itemsize
    vmem_limit = int(min(vmem_needed + (2 << 20), vmem_cap_limit))
    vmem_limit = max(vmem_limit, vmem_needed + (1 << 20))

    cost = pl.CostEstimate(
        flops=0,
        transcendentals=0,
        bytes_accessed=n * d * itemsize + d * itemsize,
    )

    return pl.pallas_call(
        _broadcast_row_kernel,
        out_shape=jax.ShapeDtypeStruct((n, d), dtype),
        grid_spec=pltpu.PrefetchScalarGridSpec(
            num_scalar_prefetch=0,
            grid=grid,
            in_specs=in_specs,
            out_specs=out_specs,
        ),
        compiler_params=pltpu.CompilerParams(
            dimension_semantics=dim_sem,
            vmem_limit_bytes=vmem_limit,
        ),
        cost_estimate=cost,
    )(emb_row)


def featureless_embedding(x: jax.Array, embedding: jax.Array) -> jax.Array:
    """Pallas equivalent of FeaturelessEmbedding.forward.

    x:         any array whose leading dim is the batch size N (contents unused)
    embedding: (1, d_model) parameter
    returns:   (N, d_model) with the embedding row repeated N times
    """
    n = int(x.shape[0])
    d_model = int(embedding.shape[1])
    dtype = embedding.dtype

    if n == 0:
        # Degenerate batch: avoid a zero-size grid axis.
        return jnp.zeros((0, d_model), dtype=dtype)

    # Lane-dense repack: fold g rows together so the kernel output's last dim
    # is a multiple of 128 (only when d_model is ragged and g divides n).
    g = 1
    if d_model % _LANE != 0:
        g_candidate = _LANE // math.gcd(d_model, _LANE)
        if g_candidate > 1 and n % g_candidate == 0:
            g = g_candidate

    if g == 1:
        return _broadcast_rows(embedding, n, d_model)

    emb_packed = jnp.tile(embedding, (1, g))          # (1, g*d_model), tiny op
    out = _broadcast_rows(emb_packed, n // g, g * d_model)
    return out.reshape(n, d_model)                    # contiguous, no-op reshape


if __name__ == "__main__":
    key = jax.random.PRNGKey(0)
    k_emb, k_x, k_emb2 = jax.random.split(key, 3)

    d_model = 128
    embedding = jax.random.normal(k_emb, (1, d_model), dtype=jnp.float32)

    # Case 1: small, sublane-aligned batch (full-row, 1-D grid path).
    batch = 8
    x = jax.random.normal(k_x, (batch, 16), dtype=jnp.float32)
    out = jax.block_until_ready(featureless_embedding(x, embedding))
    ref = jnp.tile(embedding, (batch, 1))
    assert out.shape == (batch, d_model)
    assert jnp.allclose(out, ref), "mismatch vs reference (batch=8)"

    # Case 2: awkward batch size (ragged last output block).
    batch2 = 13
    x2 = jax.random.normal(k_x, (batch2, 16), dtype=jnp.float32)
    out2 = jax.block_until_ready(featureless_embedding(x2, embedding))
    ref2 = jnp.tile(embedding, (batch2, 1))
    assert out2.shape == (batch2, d_model)
    assert jnp.allclose(out2, ref2), "mismatch vs reference (batch=13)"

    # Case 3: d_model not a multiple of 128 -> lane-dense repack path (g=8).
    d_small = 48
    embedding3 = jax.random.normal(k_emb2, (1, d_small), dtype=jnp.float32)
    batch3 = 16
    x3 = jax.random.normal(k_x, (batch3, 4), dtype=jnp.float32)
    out3 = jax.block_until_ready(featureless_embedding(x3, embedding3))
    ref3 = jnp.tile(embedding3, (batch3, 1))
    assert out3.shape == (batch3, d_small)
    assert jnp.allclose(out3, ref3), "mismatch vs reference (d_model=48)"

    # Case 4: ragged d_model AND batch not divisible by g -> ragged-lane path.
    batch4 = 13
    x4 = jax.random.normal(k_x, (batch4, 4), dtype=jnp.float32)
    out4 = jax.block_until_ready(featureless_embedding(x4, embedding3))
    ref4 = jnp.tile(embedding3, (batch4, 1))
    assert out4.shape == (batch4, d_small)
    assert jnp.allclose(out4, ref4), "mismatch vs reference (ragged lane)"

    print("KERNEL_OK")
</pallas_src>

<mosaic_0001>
module attributes {stable_mosaic.version = 11 : i64} {
  func.func @_broadcast_row_kernel(%arg0: i32, %arg1: memref<1x128xf32, #tpu.memory_space<vmem>>, %arg2: memref<8x128xf32, #tpu.memory_space<vmem>>) attributes {dimension_semantics = [#tpu.dimension_semantics<parallel>], iteration_bounds = array<i64: 1>, scalar_prefetch = 0 : i64, scratch_operands = 0 : i64, tpu.core_type = #tpu.core_type<tc>, window_params = [{pipeline_mode = #tpu.pipeline_mode<synchronous>, transform_indices = @transform_0, window_bounds = array<i64: 1, 128>}, {transform_indices = @transform_1, window_bounds = array<i64: 8, 128>}]} {
    %c0 = arith.constant 0 : index
    %c0_0 = arith.constant 0 : index
    %0 = vector.load %arg1[%c0, %c0_0] : memref<1x128xf32, #tpu.memory_space<vmem>>, vector<1x128xf32>
    %1 = vector.shape_cast %0 : vector<1x128xf32> to vector<1x128xf32>
    %2 = vector.broadcast %1 : vector<1x128xf32> to vector<8x128xf32>
    %c0_1 = arith.constant 0 : index
    %c0_2 = arith.constant 0 : index
    %3 = vector.load %arg2[%c0_1, %c0_2] : memref<8x128xf32, #tpu.memory_space<vmem>>, vector<8x128xf32>
    tpu.vector_store %arg2[%c0_1, %c0_2], %2 {strides = array<i32>} : memref<8x128xf32, #tpu.memory_space<vmem>>, vector<8x128xf32>,
    return
  }
  func.func @transform_0(%arg0: i32) -> (i32, i32) {
    %c0_i32 = arith.constant 0 : i32
    %c0_i32_0 = arith.constant 0 : i32
    %c0_i32_1 = arith.constant 0 : i32
    return %c0_i32, %c0_i32_0 : i32, i32
  }
  func.func @transform_1(%arg0: i32) -> (i32, i32) {
    %c0_i32 = arith.constant 0 : i32
    %c0_i32_0 = arith.constant 0 : i32
    return %arg0, %c0_i32 : i32, i32
  }
}

</mosaic_0001>

<llo_original>
// kernel: tpu_custom_call.1
$region0: #{tpu_custom_call.1}
  #allocation0 [shape = 'u32[]', space=smem, size = 0x4, offset = 0x4, fixed_abs, tag = 'smem constant byte address 0x4 - core index']
  #allocation1 [shape = 'u32[72,128]{1,0:T(1,128)}', space=vmem, size = 0x9000, scoped, tag = 'internal scratch']
  %s0 = inlined_call_operand.hbm [shape: f32[1,128], index: 0, kind: input, shape index: {}]
  %s1 = inlined_call_operand.hbm [shape: f32[8,128], index: 1, kind: output, shape index: {}]
  %s2 = sld [smem:[#allocation0]]
  $region18: #{tpu_custom_call.1} parent=0
    _
  %s4 = ssub.s32 1, %s2
  %s5 = scalar_select 0, %s4, %s2
  $region1: #{tpu_custom_call.1} parent=0
    #allocation2 [shape = 'u8[512]{0}', space=vmem, size = 0x400, scoped, tag = 'input window, operand 0, single buffered']
    #allocation3 [shape = 's32[1]{0}', space=sflag, size = 0x4, scoped, tag = 'scoped memory for tpu_custom_call.1']
    #allocation4 [shape = 's32[1]{0}', space=sflag, size = 0x4, scoped, tag = 'scoped memory for tpu_custom_call.1']
    #allocation5 [shape = 'u8[4096]{0}', space=vmem, size = 0x1000, scoped, tag = 'output window, operand 0, single buffered']
    %6 = vsyncpa [#allocation3], 0
    %7 = vsyncpa [#allocation4], 0
    // Predicated region
    $region2: #{tpu_custom_call.1} parent=1 // pred_check
      _
    $region3: #{tpu_custom_call.1} parent=1 // pred_check_branch
      %9 = sbr.rel (0) target = $region5
    $region4: #{tpu_custom_call.1} parent=1 // pred_region
      %11 = vsyncadd [#allocation3], 0
      %s13 = sshll.u32 %s0, 4
      %s14 = int_to_ptr.hbm [resolvable:$true] %s13
      %s15 = sshll.u32 [#allocation2], 4
      %s16 = int_to_ptr.vmem [resolvable:$true] %s15
      %18 = dma.hbm_to_vmem [thread:$0]  %s14, 16, %s16, [#allocation3]
    $region5: #{tpu_custom_call.1} parent=1 // pred_fallthru
      _
    // Predicated region
    $region6: #{tpu_custom_call.1} parent=1 // pred_check
      _
    $region7: #{tpu_custom_call.1} parent=1 // pred_check_branch
      %20 = sbr.rel (0) target = $region9
    $region8: #{tpu_custom_call.1} parent=1 // pred_region
      %22 = dma.done [#allocation3], 16
    $region9: #{tpu_custom_call.1} parent=1 // pred_fallthru
      _
    %v23 = vld [vmem:[#allocation2] sm:$0x1]
    %v25 = vperm.slane %v23, 0
    %27 = vst [vmem:[#allocation5] sm:$0xff] %v25
    // Predicated region
    $region10: #{tpu_custom_call.1} parent=1 // pred_check
      _
    $region11: #{tpu_custom_call.1} parent=1 // pred_check_branch
      %29 = sbr.rel (0) target = $region13
    $region12: #{tpu_custom_call.1} parent=1 // pred_region
      %31 = vsyncadd [#allocation4], 0
      %s33 = sshll.u32 [#allocation5], 4
      %s34 = int_to_ptr.vmem [resolvable:$true] %s33
      %s35 = sshll.u32 %s1, 4
      %s36 = int_to_ptr.hbm [resolvable:$true] %s35
      %38 = dma.vmem_to_hbm [thread:$0]  %s34, 128, %s36, [#allocation4]
    $region13: #{tpu_custom_call.1} parent=1 // pred_fallthru
      _
    // Predicated region
    $region14: #{tpu_custom_call.1} parent=1 // pred_check
      _
    $region15: #{tpu_custom_call.1} parent=1 // pred_check_branch
      %40 = sbr.rel (0) target = $region17
    $region16: #{tpu_custom_call.1} parent=1 // pred_region
      %42 = dma.done [#allocation4], 128
    $region17: #{tpu_custom_call.1} parent=1 // pred_fallthru
      _
    %43 = vsyncpa [#allocation3], 1
    %44 = vsyncpa [#allocation4], 1

</llo_original>
